<compile_context>
chip_gen: v7x
topology: tpu7x:2x2x1
jax: 0.10.0
libtpu: 0.0.40
codegen_flags: <defaults>
</compile_context>

<pallas_src>
import math

import jax
import jax.numpy as jnp
from jax.experimental import pallas as pl
from jax.experimental.pallas import tpu as pltpu

_HID = 128    # hidden width padded up to one full lane tile (real width = 64)
_LANE = 128   # padded action width (real action_dim sliced off in the wrapper)


def _round_up(x, m):
    return (x + m - 1) // m * m


def _cdiv(a, b):
    return (a + b - 1) // b


def _actor_kernel(max_action):
    """Returns a kernel closure over the python-float max_action."""

    def kernel(x_ref, w1_ref, b1_ref, w2_ref, b2_ref, w3_ref, b3_ref, o_ref):
        # Layer 1: (tb, S)bf16 @ (S, 128)bf16 -> f32 acc; bias+ReLU in f32.
        h = jnp.dot(x_ref[...], w1_ref[...], preferred_element_type=jnp.float32)
        h = jnp.maximum(h + b1_ref[...], 0.0)
        # Layer 2: (tb, 128)bf16 @ (128, 128)bf16 -> f32 acc.
        h = jnp.dot(h.astype(jnp.bfloat16), w2_ref[...],
                    preferred_element_type=jnp.float32)
        h = jnp.maximum(h + b2_ref[...], 0.0)
        # Layer 3 + tanh + scale (f32 elementwise; padded lanes stay inert).
        h = jnp.dot(h.astype(jnp.bfloat16), w3_ref[...],
                    preferred_element_type=jnp.float32)
        o_ref[...] = (jnp.tanh(h + b3_ref[...]) * max_action).astype(o_ref.dtype)

    return kernel


def _choose_tile(b, tile_b):
    """Pick (tb, b_pad): 16-row aligned (bf16 sublanes), minimal padding waste,
    and >= 2 grid steps whenever the batch allows (v7x has 2 TensorCores)."""
    b16 = _round_up(max(b, 1), 16)
    n_tiles = max(1, _cdiv(b16, tile_b))
    if n_tiles == 1 and b16 >= 32:
        n_tiles = 2                       # let ("parallel",) use both v7x TCs
    tb = _round_up(_cdiv(b16, n_tiles), 16)
    b_pad = _round_up(b16, tb)
    return tb, b_pad


def _actor_mlp_jax(state, params, max_action):
    """Plain-XLA dot chain with the SAME bf16-operand / f32-accumulate numerics
    as the kernel.  Used as the small-batch fallback and as the bf16 reference.
    Returns the padded (B, 128) result in f32."""
    x = state.astype(jnp.bfloat16)
    h = jnp.dot(x, params["w1"], preferred_element_type=jnp.float32)
    h = jnp.maximum(h + params["b1"], 0.0)
    h = jnp.dot(h.astype(jnp.bfloat16), params["w2"],
                preferred_element_type=jnp.float32)
    h = jnp.maximum(h + params["b2"], 0.0)
    h = jnp.dot(h.astype(jnp.bfloat16), params["w3"],
                preferred_element_type=jnp.float32)
    return jnp.tanh(h + params["b3"]) * max_action


def actor_forward(state, params, max_action, action_dim, *,
                  tile_b=2048, out_dtype=jnp.bfloat16,
                  return_padded=False, min_pallas_batch=32):
    """Run the fused 3-layer MLP on TPU via Pallas.

    state:            (B, state_dim) float32
    params:           dict with bf16 padded weights w1 (S,128), w2 (128,128),
                      w3 (128,128) and f32 biases b1/b2/b3 (1,128)
    action_dim:       real (unpadded) action dimension sliced from the output
    tile_b:           max batch tile (rows); real tile is chosen by _choose_tile
    out_dtype:        kernel output dtype (bf16 halves the dominant writeback)
    return_padded:    if True, return the padded (B_pad, 128) slab so the
                      consumer can fuse the [:B, :action_dim] slice itself
    min_pallas_batch: below this batch size use the plain-XLA path (launch
                      overhead + weight DMA dominate tiny batches)
    """
    b, s = state.shape

    # --- tiny-batch fallback: amortization, not kernel tuning, is what helps.
    if b < min_pallas_batch:
        out = _actor_mlp_jax(state, params, max_action).astype(out_dtype)
        return out if return_padded else out[:, :action_dim]

    tb, b_pad = _choose_tile(b, tile_b)

    x = state.astype(jnp.bfloat16)
    if b_pad != b:
        x = jnp.pad(x, ((0, b_pad - b), (0, 0)))

    grid = (b_pad // tb,)

    out_itemsize = jnp.dtype(out_dtype).itemsize
    weight_bytes = (s * _HID + _HID * _HID + _HID * _LANE) * 2 + 3 * _LANE * 4

    # Advisory cost hint for XLA scheduling around the custom call.
    cost = pl.CostEstimate(
        flops=2 * b_pad * (s * _HID + _HID * _HID + _HID * _LANE),
        transcendentals=b_pad * _LANE,
        bytes_accessed=b_pad * s * 2 + b_pad * _LANE * out_itemsize + weight_bytes,
    )

    # VMEM: double-buffered state + output tiles, resident weights, + headroom.
    # Only override the scoped-VMEM limit when an aggressive tile could exceed
    # the v5e default (16 MiB); cap at 64 MiB so v7x stays within physical VMEM.
    est_vmem = 2 * tb * s * 2 + 2 * tb * _LANE * out_itemsize + 2 * weight_bytes
    compiler_kwargs = dict(dimension_semantics=("parallel",))
    if est_vmem > 12 * (1 << 20):
        compiler_kwargs["vmem_limit_bytes"] = min(
            int(est_vmem * 1.5) + (1 << 20), 64 * (1 << 20))

    out = pl.pallas_call(
        _actor_kernel(float(max_action)),
        out_shape=jax.ShapeDtypeStruct((b_pad, _LANE), out_dtype),
        grid=grid,
        in_specs=[
            pl.BlockSpec((tb, s), lambda i: (i, 0)),        # state tile (pipelined)
            # Weights/biases: constant index_map -> (0,0); the pipeliner elides
            # the re-DMA across grid steps, so they are effectively resident.
            pl.BlockSpec((s, _HID), lambda i: (0, 0)),      # w1
            pl.BlockSpec((1, _HID), lambda i: (0, 0)),      # b1
            pl.BlockSpec((_HID, _HID), lambda i: (0, 0)),   # w2
            pl.BlockSpec((1, _HID), lambda i: (0, 0)),      # b2
            pl.BlockSpec((_HID, _LANE), lambda i: (0, 0)),  # w3
            pl.BlockSpec((1, _LANE), lambda i: (0, 0)),     # b3
        ],
        out_specs=pl.BlockSpec((tb, _LANE), lambda i: (i, 0)),
        compiler_params=pltpu.CompilerParams(**compiler_kwargs),
        cost_estimate=cost,
    )(
        x,
        params["w1"], params["b1"],
        params["w2"], params["b2"],
        params["w3"], params["b3"],
    )

    if return_padded:
        return out
    return out[:b, :action_dim]


def xavier_uniform(key, fan_in, fan_out, gain=1.0):
    """Matches torch.nn.init.xavier_uniform_ on a (fan_out, fan_in) weight,
    returned here already transposed to (fan_in, fan_out)."""
    bound = gain * math.sqrt(6.0 / (fan_in + fan_out))
    return jax.random.uniform(
        key, (fan_in, fan_out), dtype=jnp.float32, minval=-bound, maxval=bound
    )


def _pad_to(x, rows, cols):
    r, c = x.shape
    return jnp.pad(x, ((0, rows - r), (0, cols - c)))


def init_actor_params(key, state_dim, action_dim):
    """Xavier-init real-size weights, then zero-pad to lane-dense shapes ONCE.

    Weights are stored bf16 (MXU operands); biases stay f32 (VPU operands).
    Padded rows/cols are zero so the sliced output is exact.
    """
    k1, k2, k3 = jax.random.split(key, 3)
    # init_weights applies xavier_uniform_ (gain=1.0) to nn.Linear layers;
    # the relu-gain branch only touches Conv2d, which Actor has none of.
    w1 = xavier_uniform(k1, state_dim, 64)
    w2 = xavier_uniform(k2, 64, 64)
    w3 = xavier_uniform(k3, 64, action_dim)
    b1 = jnp.zeros((1, 64), jnp.float32)
    b2 = jnp.zeros((1, 64), jnp.float32)
    b3 = jnp.zeros((1, action_dim), jnp.float32)

    params = {
        # bf16, zero-padded to lane-dense shapes (done once, not per call)
        "w1": _pad_to(w1, state_dim, _HID).astype(jnp.bfloat16),
        "w2": _pad_to(w2, _HID, _HID).astype(jnp.bfloat16),
        "w3": _pad_to(w3, _HID, _LANE).astype(jnp.bfloat16),
        "b1": _pad_to(b1, 1, _HID),
        "b2": _pad_to(b2, 1, _HID),
        "b3": _pad_to(b3, 1, _LANE),
        # f32, unpadded copies kept only for the full-precision reference check
        "w1_f32": w1, "w2_f32": w2, "w3_f32": w3,
        "b1_f32": b1, "b2_f32": b2, "b3_f32": b3,
    }
    return params


def actor_ref_bf16(state, params, max_action, action_dim):
    """Pure-JAX reference with the SAME bf16-operand / f32-accumulate numerics
    as the kernel (uses the padded params directly, then slices)."""
    return _actor_mlp_jax(state, params, max_action)[:, :action_dim]


def actor_ref_f32(state, params, max_action):
    """Full-precision reference matching the PyTorch module semantics."""
    h = jnp.maximum(state @ params["w1_f32"] + params["b1_f32"], 0.0)
    h = jnp.maximum(h @ params["w2_f32"] + params["b2_f32"], 0.0)
    return jnp.tanh(h @ params["w3_f32"] + params["b3_f32"]) * max_action


if __name__ == "__main__":
    key = jax.random.PRNGKey(0)
    k_param, k_state, k_state2 = jax.random.split(key, 3)

    batch = 2
    state_dim = 8
    action_dim = 4
    max_action = 2.0

    params = init_actor_params(k_param, state_dim, action_dim)
    state = jax.random.normal(k_state, (batch, state_dim), dtype=jnp.float32)

    # --- Test 1: small batch, Pallas path forced (min_pallas_batch=0). -------
    out = actor_forward(state, params, max_action, action_dim, min_pallas_batch=0)
    out = jax.block_until_ready(out)
    assert out.shape == (batch, action_dim), out.shape

    out_f32 = out.astype(jnp.float32)
    ref_bf16 = actor_ref_bf16(state, params, max_action, action_dim)
    assert jnp.allclose(out_f32, ref_bf16, atol=2e-2, rtol=2e-2), (out_f32, ref_bf16)

    ref_f32 = actor_ref_f32(state, params, max_action)
    assert jnp.allclose(out_f32, ref_f32, atol=3e-2, rtol=3e-2), (out_f32, ref_f32)

    # --- Test 2: default dispatch at small batch uses the XLA fallback. ------
    out_small = actor_forward(state, params, max_action, action_dim)
    out_small = jax.block_until_ready(out_small).astype(jnp.float32)
    assert out_small.shape == (batch, action_dim)
    assert jnp.allclose(out_small, ref_bf16, atol=2e-2, rtol=2e-2)

    # --- Test 3: larger, non-multiple-of-16 batch exercises the multi-tile ---
    # grid (>=2 steps), 16-row padding and the bf16 lane-dense writeback.
    batch2 = 400
    state2 = jax.random.normal(k_state2, (batch2, state_dim), dtype=jnp.float32)
    out2 = actor_forward(state2, params, max_action, action_dim)
    out2 = jax.block_until_ready(out2).astype(jnp.float32)
    assert out2.shape == (batch2, action_dim), out2.shape
    ref2 = actor_ref_bf16(state2, params, max_action, action_dim)
    assert jnp.allclose(out2, ref2, atol=2e-2, rtol=2e-2)

    print("KERNEL_OK")
</pallas_src>

<mosaic_0001>
module attributes {stable_mosaic.version = 11 : i64} {
  func.func @kernel(%arg0: i32, %arg1: memref<16x8xbf16, #tpu.memory_space<vmem>>, %arg2: memref<8x128xbf16, #tpu.memory_space<vmem>>, %arg3: memref<1x128xf32, #tpu.memory_space<vmem>>, %arg4: memref<128x128xbf16, #tpu.memory_space<vmem>>, %arg5: memref<1x128xf32, #tpu.memory_space<vmem>>, %arg6: memref<128x128xbf16, #tpu.memory_space<vmem>>, %arg7: memref<1x128xf32, #tpu.memory_space<vmem>>, %arg8: memref<16x128xbf16, #tpu.memory_space<vmem>>) attributes {dimension_semantics = [#tpu.dimension_semantics<parallel>], iteration_bounds = array<i64: 1>, scalar_prefetch = 0 : i64, scratch_operands = 0 : i64, tpu.core_type = #tpu.core_type<tc>, window_params = [{transform_indices = @transform_0, window_bounds = array<i64: 16, 8>}, {pipeline_mode = #tpu.pipeline_mode<synchronous>, transform_indices = @transform_1, window_bounds = array<i64: 8, 128>}, {pipeline_mode = #tpu.pipeline_mode<synchronous>, transform_indices = @transform_2, window_bounds = array<i64: 1, 128>}, {pipeline_mode = #tpu.pipeline_mode<synchronous>, transform_indices = @transform_3, window_bounds = array<i64: 128, 128>}, {pipeline_mode = #tpu.pipeline_mode<synchronous>, transform_indices = @transform_4, window_bounds = array<i64: 1, 128>}, {pipeline_mode = #tpu.pipeline_mode<synchronous>, transform_indices = @transform_5, window_bounds = array<i64: 128, 128>}, {pipeline_mode = #tpu.pipeline_mode<synchronous>, transform_indices = @transform_6, window_bounds = array<i64: 1, 128>}, {transform_indices = @transform_7, window_bounds = array<i64: 16, 128>}]} {
    %c0 = arith.constant 0 : index
    %c0_0 = arith.constant 0 : index
    %0 = vector.load %arg1[%c0, %c0_0] : memref<16x8xbf16, #tpu.memory_space<vmem>>, vector<16x8xbf16>
    %c0_1 = arith.constant 0 : index
    %c0_2 = arith.constant 0 : index
    %1 = vector.load %arg2[%c0_1, %c0_2] : memref<8x128xbf16, #tpu.memory_space<vmem>>, vector<8x128xbf16>
    %cst = arith.constant dense<0.000000e+00> : vector<16x128xf32>
    %2 = tpu.matmul %0, %1, %cst {dimension_numbers = #tpu.dot_dimension_numbers<[1], [0], [0], [1], [0, 0, 1, 1], [], []>} : vector<16x8xbf16>, vector<8x128xbf16>, vector<16x128xf32> -> vector<16x128xf32>
    %c0_3 = arith.constant 0 : index
    %c0_4 = arith.constant 0 : index
    %3 = vector.load %arg3[%c0_3, %c0_4] : memref<1x128xf32, #tpu.memory_space<vmem>>, vector<1x128xf32>
    %4 = vector.broadcast %3 : vector<1x128xf32> to vector<16x128xf32>
    %5 = arith.addf %2, %4 : vector<16x128xf32>
    %cst_5 = arith.constant 0.000000e+00 : f32
    %6 = vector.broadcast %cst_5 : f32 to vector<16x128xf32>
    %7 = arith.maximumf %5, %6 : vector<16x128xf32>
    %8 = arith.truncf %7 : vector<16x128xf32> to vector<16x128xbf16>
    %c0_6 = arith.constant 0 : index
    %c0_7 = arith.constant 0 : index
    %9 = vector.load %arg4[%c0_6, %c0_7] : memref<128x128xbf16, #tpu.memory_space<vmem>>, vector<128x128xbf16>
    %cst_8 = arith.constant dense<0.000000e+00> : vector<16x128xf32>
    %10 = tpu.matmul %8, %9, %cst_8 {dimension_numbers = #tpu.dot_dimension_numbers<[1], [0], [0], [1], [0, 0, 1, 1], [], []>} : vector<16x128xbf16>, vector<128x128xbf16>, vector<16x128xf32> -> vector<16x128xf32>
    %c0_9 = arith.constant 0 : index
    %c0_10 = arith.constant 0 : index
    %11 = vector.load %arg5[%c0_9, %c0_10] : memref<1x128xf32, #tpu.memory_space<vmem>>, vector<1x128xf32>
    %12 = vector.broadcast %11 : vector<1x128xf32> to vector<16x128xf32>
    %13 = arith.addf %10, %12 : vector<16x128xf32>
    %cst_11 = arith.constant 0.000000e+00 : f32
    %14 = vector.broadcast %cst_11 : f32 to vector<16x128xf32>
    %15 = arith.maximumf %13, %14 : vector<16x128xf32>
    %16 = arith.truncf %15 : vector<16x128xf32> to vector<16x128xbf16>
    %c0_12 = arith.constant 0 : index
    %c0_13 = arith.constant 0 : index
    %17 = vector.load %arg6[%c0_12, %c0_13] : memref<128x128xbf16, #tpu.memory_space<vmem>>, vector<128x128xbf16>
    %cst_14 = arith.constant dense<0.000000e+00> : vector<16x128xf32>
    %18 = tpu.matmul %16, %17, %cst_14 {dimension_numbers = #tpu.dot_dimension_numbers<[1], [0], [0], [1], [0, 0, 1, 1], [], []>} : vector<16x128xbf16>, vector<128x128xbf16>, vector<16x128xf32> -> vector<16x128xf32>
    %c0_15 = arith.constant 0 : index
    %c0_16 = arith.constant 0 : index
    %19 = vector.load %arg7[%c0_15, %c0_16] : memref<1x128xf32, #tpu.memory_space<vmem>>, vector<1x128xf32>
    %20 = vector.broadcast %19 : vector<1x128xf32> to vector<16x128xf32>
    %21 = arith.addf %18, %20 : vector<16x128xf32>
    %22 = math.tanh %21 : vector<16x128xf32>
    %cst_17 = arith.constant 2.000000e+00 : f32
    %23 = vector.broadcast %cst_17 : f32 to vector<16x128xf32>
    %24 = arith.mulf %22, %23 : vector<16x128xf32>
    %25 = arith.truncf %24 : vector<16x128xf32> to vector<16x128xbf16>
    %c0_18 = arith.constant 0 : index
    %c0_19 = arith.constant 0 : index
    %26 = vector.load %arg8[%c0_18, %c0_19] : memref<16x128xbf16, #tpu.memory_space<vmem>>, vector<16x128xbf16>
    tpu.vector_store %arg8[%c0_18, %c0_19], %25 {strides = array<i32>} : memref<16x128xbf16, #tpu.memory_space<vmem>>, vector<16x128xbf16>,
    return
  }
  func.func @transform_0(%arg0: i32) -> (i32, i32) {
    %c0_i32 = arith.constant 0 : i32
    %c0_i32_0 = arith.constant 0 : i32
    return %arg0, %c0_i32 : i32, i32
  }
  func.func @transform_1(%arg0: i32) -> (i32, i32) {
    %c0_i32 = arith.constant 0 : i32
    %c0_i32_0 = arith.constant 0 : i32
    %c0_i32_1 = arith.constant 0 : i32
    return %c0_i32, %c0_i32_0 : i32, i32
  }
  func.func @transform_2(%arg0: i32) -> (i32, i32) {
    %c0_i32 = arith.constant 0 : i32
    %c0_i32_0 = arith.constant 0 : i32
    %c0_i32_1 = arith.constant 0 : i32
    return %c0_i32, %c0_i32_0 : i32, i32
  }
  func.func @transform_3(%arg0: i32) -> (i32, i32) {
    %c0_i32 = arith.constant 0 : i32
    %c0_i32_0 = arith.constant 0 : i32
    %c0_i32_1 = arith.constant 0 : i32
    return %c0_i32, %c0_i32_0 : i32, i32
  }
  func.func @transform_4(%arg0: i32) -> (i32, i32) {
    %c0_i32 = arith.constant 0 : i32
    %c0_i32_0 = arith.constant 0 : i32
    %c0_i32_1 = arith.constant 0 : i32
    return %c0_i32, %c0_i32_0 : i32, i32
  }
  func.func @transform_5(%arg0: i32) -> (i32, i32) {
    %c0_i32 = arith.constant 0 : i32
    %c0_i32_0 = arith.constant 0 : i32
    %c0_i32_1 = arith.constant 0 : i32
    return %c0_i32, %c0_i32_0 : i32, i32
  }
  func.func @transform_6(%arg0: i32) -> (i32, i32) {
    %c0_i32 = arith.constant 0 : i32
    %c0_i32_0 = arith.constant 0 : i32
    %c0_i32_1 = arith.constant 0 : i32
    return %c0_i32, %c0_i32_0 : i32, i32
  }
  func.func @transform_7(%arg0: i32) -> (i32, i32) {
    %c0_i32 = arith.constant 0 : i32
    %c0_i32_0 = arith.constant 0 : i32
    return %arg0, %c0_i32 : i32, i32
  }
}

</mosaic_0001>

<llo_original>
// kernel: tpu_custom_call.1
$region0: #{tpu_custom_call.1}
  #allocation0 [shape = 'u32[]', space=smem, size = 0x4, offset = 0x4, fixed_abs, tag = 'smem constant byte address 0x4 - core index']
  #allocation1 [shape = 'u32[144,128]{1,0:T(1,128)}', space=vmem, size = 0x12000, scoped, tag = 'internal scratch']
  %s0 = inlined_call_operand.vmem [shape: bf16[16,8], index: 0, kind: input, shape index: {}]
  %s1 = inlined_call_operand.vmem [shape: bf16[8,128], index: 1, kind: input, shape index: {}]
  %s2 = inlined_call_operand.vmem [shape: f32[1,128], index: 2, kind: input, shape index: {}]
  %s3 = inlined_call_operand.hbm [shape: bf16[128,128], index: 3, kind: input, shape index: {}]
  %s4 = inlined_call_operand.vmem [shape: f32[1,128], index: 4, kind: input, shape index: {}]
  %s5 = inlined_call_operand.hbm [shape: bf16[128,128], index: 5, kind: input, shape index: {}]
  %s6 = inlined_call_operand.vmem [shape: f32[1,128], index: 6, kind: input, shape index: {}]
  %s7 = inlined_call_operand.hbm [shape: bf16[16,128], index: 7, kind: output, shape index: {}]
  %s8 = sld [smem:[#allocation0]]
  $region46: #{tpu_custom_call.1} parent=0
    _
  %s10 = ssub.s32 1, %s8
  %s11 = scalar_select 0, %s10, %s8
  $region1: #{tpu_custom_call.1} parent=0
    #allocation2 [shape = 'u8[32768]{0}', space=vmem, size = 0x8000, scoped, tag = 'input window, operand 3, single buffered']
    #allocation3 [shape = 's32[1]{0}', space=sflag, size = 0x4, scoped, tag = 'scoped memory for tpu_custom_call.1']
    #allocation4 [shape = 's32[1]{0}', space=sflag, size = 0x4, scoped, tag = 'scoped memory for tpu_custom_call.1']
    #allocation5 [shape = 'u8[32768]{0}', space=vmem, size = 0x8000, scoped, tag = 'input window, operand 5, single buffered']
    #allocation6 [shape = 's32[1]{0}', space=sflag, size = 0x4, scoped, tag = 'scoped memory for tpu_custom_call.1']
    #allocation7 [shape = 'u8[4096]{0}', space=vmem, size = 0x1000, scoped, tag = 'output window, operand 0, single buffered']
    %12 = vsyncpa [#allocation3], 0
    %13 = vsyncpa [#allocation6], 0
    %14 = vsyncpa [#allocation4], 0
    // Predicated region
    $region2: #{tpu_custom_call.1} parent=1 // pred_check
      _
    $region3: #{tpu_custom_call.1} parent=1 // pred_check_branch
      %16 = sbr.rel (0) target = $region5
    $region4: #{tpu_custom_call.1} parent=1 // pred_region
      _
    $region5: #{tpu_custom_call.1} parent=1 // pred_fallthru
      _
    // Predicated region
    $region6: #{tpu_custom_call.1} parent=1 // pred_check
      _
    $region7: #{tpu_custom_call.1} parent=1 // pred_check_branch
      %18 = sbr.rel (0) target = $region9
    $region8: #{tpu_custom_call.1} parent=1 // pred_region
      _
    $region9: #{tpu_custom_call.1} parent=1 // pred_fallthru
      _
    // Predicated region
    $region10: #{tpu_custom_call.1} parent=1 // pred_check
      _
    $region11: #{tpu_custom_call.1} parent=1 // pred_check_branch
      %20 = sbr.rel (0) target = $region13
    $region12: #{tpu_custom_call.1} parent=1 // pred_region
      _
    $region13: #{tpu_custom_call.1} parent=1 // pred_fallthru
      _
    // Predicated region
    $region14: #{tpu_custom_call.1} parent=1 // pred_check
      _
    $region15: #{tpu_custom_call.1} parent=1 // pred_check_branch
      %22 = sbr.rel (0) target = $region17
    $region16: #{tpu_custom_call.1} parent=1 // pred_region
      %s24 = ssub.s32 1024, 1024
      %25 = vsyncadd [#allocation3], %s24
      %s26 = sshll.u32 [#allocation2], 4
      %s27 = int_to_ptr.vmem [resolvable:$true] %s26
      %32 = dma.hbm_to_vmem [thread:$0]  %s3, 1024, %s27, [#allocation3], 64, 64, 4
    $region17: #{tpu_custom_call.1} parent=1 // pred_fallthru
      _
    // Predicated region
    $region18: #{tpu_custom_call.1} parent=1 // pred_check
      _
    $region19: #{tpu_custom_call.1} parent=1 // pred_check_branch
      %34 = sbr.rel (0) target = $region21
    $region20: #{tpu_custom_call.1} parent=1 // pred_region
      _
    $region21: #{tpu_custom_call.1} parent=1 // pred_fallthru
      _
    // Predicated region
    $region22: #{tpu_custom_call.1} parent=1 // pred_check
      _
    $region23: #{tpu_custom_call.1} parent=1 // pred_check_branch
      %36 = sbr.rel (0) target = $region25
    $region24: #{tpu_custom_call.1} parent=1 // pred_region
      %s38 = ssub.s32 1024, 1024
      %39 = vsyncadd [#allocation6], %s38
      %s40 = sshll.u32 [#allocation5], 4
      %s41 = int_to_ptr.vmem [resolvable:$true] %s40
      %46 = dma.hbm_to_vmem [thread:$0]  %s5, 1024, %s41, [#allocation6], 64, 64, 4
    $region25: #{tpu_custom_call.1} parent=1 // pred_fallthru
      _
    // Predicated region
    $region26: #{tpu_custom_call.1} parent=1 // pred_check
      _
    $region27: #{tpu_custom_call.1} parent=1 // pred_check_branch
      %48 = sbr.rel (0) target = $region29
    $region28: #{tpu_custom_call.1} parent=1 // pred_region
      _
    $region29: #{tpu_custom_call.1} parent=1 // pred_fallthru
      _
    // Predicated region
    $region30: #{tpu_custom_call.1} parent=1 // pred_check
      _
    $region31: #{tpu_custom_call.1} parent=1 // pred_check_branch
      %50 = sbr.rel (0) target = $region33
    $region32: #{tpu_custom_call.1} parent=1 // pred_region
      %51 = dma.done [#allocation3], 1024
    $region33: #{tpu_custom_call.1} parent=1 // pred_fallthru
      _
    // Predicated region
    $region34: #{tpu_custom_call.1} parent=1 // pred_check
      _
    $region35: #{tpu_custom_call.1} parent=1 // pred_check_branch
      %53 = sbr.rel (0) target = $region37
    $region36: #{tpu_custom_call.1} parent=1 // pred_region
      %54 = dma.done [#allocation6], 1024
    $region37: #{tpu_custom_call.1} parent=1 // pred_fallthru
      _
    %v56 = vld [vmem:[%s0] sm:$0xf]
    %v57 = vld [vmem:[%s0 + $0x4] sm:$0xf]
    %v58 = vld [vmem:[%s1] sm:$0xf]
    %v59 = vld [vmem:[%s2] sm:$0x1]
    %v61 = vlaneseq
    %v62 = vshrl.u32 %v61, 7
    %v63 = vsub.s32 0, %v62
    %v64 = vrot.slane %v59, %v63
    %v68 = vunpack.c.l.b16 %v56
    %v69 = vunpack.c.l.b16 %v57
    %v70 = vpack.c.b16 %v69, %v68
    %vm71 = vcmask 64512
    %v73 = vsel %vm71, %v70, 0
    %vm75 = vcmask 1043456
    %v77 = vsel %vm75, %v58, 0
    %79 = vmatprep.subr.bf16.mxu0 0
    %80 = vmatpush1.bf16.msra.mxu0 %v77
    %81 = vmatprep.subr.bf16.mxu0 0
    %82 = vmatpush1.bf16.msra.mxu0 0
    %83 = vmatprep.subr.bf16.mxu0 0
    %84 = vmatpush1.bf16.msra.mxu0 0
    %85 = vmatprep.subr.bf16.mxu0 0
    %86 = vmatpush1.bf16.msra.mxu0 0
    %87 = vmatprep.subr.bf16.mxu0 0
    %88 = vmatpush1.bf16.msra.mxu0 0
    %89 = vmatprep.subr.bf16.mxu0 0
    %90 = vmatpush1.bf16.msra.mxu0 0
    %91 = vmatprep.subr.bf16.mxu0 0
    %92 = vmatpush1.bf16.msra.mxu0 0
    %93 = vmatprep.subr.bf16.mxu0 0
    %94 = vmatpush1.bf16.msra.mxu0 0
    %95 = vmatprep.subr.bf16.mxu0 0
    %96 = vmatpush1.bf16.msra.mxu0 0
    %97 = vmatprep.subr.bf16.mxu0 0
    %98 = vmatpush1.bf16.msra.mxu0 0
    %99 = vmatprep.subr.bf16.mxu0 0
    %100 = vmatpush1.bf16.msra.mxu0 0
    %101 = vmatprep.subr.bf16.mxu0 0
    %102 = vmatpush1.bf16.msra.mxu0 0
    %103 = vmatprep.subr.bf16.mxu0 0
    %104 = vmatpush1.bf16.msra.mxu0 0
    %105 = vmatprep.subr.bf16.mxu0 0
    %106 = vmatpush1.bf16.msra.mxu0 0
    %107 = vmatprep.subr.bf16.mxu0 0
    %108 = vmatpush1.bf16.msra.mxu0 0
    %109 = vmatprep.subr.bf16.mxu0 0
    %110 = vmatpush1.bf16.msra.mxu0 0
    %111 = vmatprep.mubr.bf16.mxu0 0
    %112 = vmatmul.mubr.bf16.gmra.mrb[0].mxu0 %v73
    %v113 = vpop.f32.mrb[0].mxu0
    %v114 = vadd.f32 %v64, %v113
    %v115 = vpop.f32.mrb[0].mxu0
    %v116 = vpop.f32.mrb[0].mxu0
    %v117 = vadd.f32 %v64, %v116
    %v118 = vpop.f32.mrb[0].mxu0
    %119 = vdwg.mxu0
    %v120 = vmax.f32 %v114, 0.0
    %v121 = vmax.f32 %v117, 0.0
    %v122 = vpack.c.bf16 %v121, %v120
    %v123 = vld [vmem:[#allocation2] sm:$0xf]
    %v124 = vld [vmem:[#allocation2 + $0x4] sm:$0xf]
    %v125 = vld [vmem:[#allocation2 + $0x8] sm:$0xf]
    %v126 = vld [vmem:[#allocation2 + $0xc] sm:$0xf]
    %v127 = vld [vmem:[#allocation2 + $0x10] sm:$0xf]
    %v128 = vld [vmem:[#allocation2 + $0x14] sm:$0xf]
    %v129 = vld [vmem:[#allocation2 + $0x18] sm:$0xf]
    %v130 = vld [vmem:[#allocation2 + $0x1c] sm:$0xf]
    %v131 = vld [vmem:[#allocation2 + $0x20] sm:$0xf]
    %v132 = vld [vmem:[#allocation2 + $0x24] sm:$0xf]
    %v133 = vld [vmem:[#allocation2 + $0x28] sm:$0xf]
    %v134 = vld [vmem:[#allocation2 + $0x2c] sm:$0xf]
    %v135 = vld [vmem:[#allocation2 + $0x30] sm:$0xf]
    %v136 = vld [vmem:[#allocation2 + $0x34] sm:$0xf]
    %v137 = vld [vmem:[#allocation2 + $0x38] sm:$0xf]
    %v138 = vld [vmem:[#allocation2 + $0x3c] sm:$0xf]
    %v139 = vld [vmem:[%s4] sm:$0x1]
    %v141 = vlaneseq
    %v142 = vshrl.u32 %v141, 7
    %v143 = vsub.s32 0, %v142
    %v144 = vrot.slane %v139, %v143
    %v162 = vunpack.c.l.b16 %v123
    %v163 = vunpack.c.l.b16 %v124
    %v164 = vunpack.c.l.b16 %v125
    %v165 = vunpack.c.l.b16 %v126
    %v166 = vunpack.c.l.b16 %v127
    %v167 = vunpack.c.l.b16 %v128
    %v168 = vunpack.c.l.b16 %v129
    %v169 = vunpack.c.l.b16 %v130
    %v170 = vunpack.c.l.b16 %v131
    %v171 = vunpack.c.l.b16 %v132
    %v172 = vunpack.c.l.b16 %v133
    %v173 = vunpack.c.l.b16 %v134
    %v174 = vunpack.c.l.b16 %v135
    %v175 = vunpack.c.l.b16 %v136
    %v176 = vunpack.c.l.b16 %v137
    %v177 = vunpack.c.l.b16 %v138
    %v178 = vpack.c.b16 %v163, %v162
    %v179 = vpack.c.b16 %v165, %v164
    %v180 = vpack.c.b16 %v167, %v166
    %v181 = vpack.c.b16 %v169, %v168
    %v182 = vpack.c.b16 %v171, %v170
    %v183 = vpack.c.b16 %v173, %v172
    %v184 = vpack.c.b16 %v175, %v174
    %v185 = vpack.c.b16 %v177, %v176
    %194 = vmatprep.subr.bf16.mxu0 0
    %195 = vmatpush1.bf16.msra.mxu0 %v178
    %196 = vmatprep.subr.bf16.mxu0 0
    %197 = vmatpush1.bf16.msra.mxu0 %v179
    %198 = vmatprep.subr.bf16.mxu0 0
    %199 = vmatpush1.bf16.msra.mxu0 %v180
    %200 = vmatprep.subr.bf16.mxu0 0
    %201 = vmatpush1.bf16.msra.mxu0 %v181
    %202 = vmatprep.subr.bf16.mxu0 0
    %203 = vmatpush1.bf16.msra.mxu0 %v182
    %204 = vmatprep.subr.bf16.mxu0 0
    %205 = vmatpush1.bf16.msra.mxu0 %v183
    %206 = vmatprep.subr.bf16.mxu0 0
    %207 = vmatpush1.bf16.msra.mxu0 %v184
    %208 = vmatprep.subr.bf16.mxu0 0
    %209 = vmatpush1.bf16.msra.mxu0 %v185
    %210 = vmatprep.subr.bf16.mxu0 0
    %211 = vmatpush1.bf16.msra.mxu0 0
    %212 = vmatprep.subr.bf16.mxu0 0
    %213 = vmatpush1.bf16.msra.mxu0 0
    %214 = vmatprep.subr.bf16.mxu0 0
    %215 = vmatpush1.bf16.msra.mxu0 0
    %216 = vmatprep.subr.bf16.mxu0 0
    %217 = vmatpush1.bf16.msra.mxu0 0
    %218 = vmatprep.subr.bf16.mxu0 0
    %219 = vmatpush1.bf16.msra.mxu0 0
    %220 = vmatprep.subr.bf16.mxu0 0
    %221 = vmatpush1.bf16.msra.mxu0 0
    %222 = vmatprep.subr.bf16.mxu0 0
    %223 = vmatpush1.bf16.msra.mxu0 0
    %224 = vmatprep.subr.bf16.mxu0 0
    %225 = vmatpush1.bf16.msra.mxu0 0
    %226 = vmatprep.mubr.bf16.mxu0 0
    %227 = vmatmul.mubr.bf16.gmra.mrb[0].mxu0 %v122
    %v228 = vpop.f32.mrb[0].mxu0
    %v229 = vadd.f32 %v144, %v228
    %v230 = vpop.f32.mrb[0].mxu0
    %v231 = vpop.f32.mrb[0].mxu0
    %v232 = vadd.f32 %v144, %v231
    %v233 = vpop.f32.mrb[0].mxu0
    %234 = vdwg.mxu0
    %v235 = vmax.f32 %v229, 0.0
    %v236 = vmax.f32 %v232, 0.0
    %v237 = vpack.c.bf16 %v236, %v235
    %v238 = vld [vmem:[#allocation5] sm:$0xf]
    %v239 = vld [vmem:[#allocation5 + $0x4] sm:$0xf]
    %v240 = vld [vmem:[#allocation5 + $0x8] sm:$0xf]
    %v241 = vld [vmem:[#allocation5 + $0xc] sm:$0xf]
    %v242 = vld [vmem:[#allocation5 + $0x10] sm:$0xf]
    %v243 = vld [vmem:[#allocation5 + $0x14] sm:$0xf]
    %v244 = vld [vmem:[#allocation5 + $0x18] sm:$0xf]
    %v245 = vld [vmem:[#allocation5 + $0x1c] sm:$0xf]
    %v246 = vld [vmem:[#allocation5 + $0x20] sm:$0xf]
    %v247 = vld [vmem:[#allocation5 + $0x24] sm:$0xf]
    %v248 = vld [vmem:[#allocation5 + $0x28] sm:$0xf]
    %v249 = vld [vmem:[#allocation5 + $0x2c] sm:$0xf]
    %v250 = vld [vmem:[#allocation5 + $0x30] sm:$0xf]
    %v251 = vld [vmem:[#allocation5 + $0x34] sm:$0xf]
    %v252 = vld [vmem:[#allocation5 + $0x38] sm:$0xf]
    %v253 = vld [vmem:[#allocation5 + $0x3c] sm:$0xf]
    %v254 = vld [vmem:[%s6] sm:$0x1]
    %v256 = vlaneseq
    %v257 = vshrl.u32 %v256, 7
    %v258 = vsub.s32 0, %v257
    %v259 = vrot.slane %v254, %v258
    %v277 = vunpack.c.l.b16 %v238
    %v278 = vunpack.c.l.b16 %v239
    %v279 = vunpack.c.l.b16 %v240
    %v280 = vunpack.c.l.b16 %v241
    %v281 = vunpack.c.l.b16 %v242
    %v282 = vunpack.c.l.b16 %v243
    %v283 = vunpack.c.l.b16 %v244
    %v284 = vunpack.c.l.b16 %v245
    %v285 = vunpack.c.l.b16 %v246
    %v286 = vunpack.c.l.b16 %v247
    %v287 = vunpack.c.l.b16 %v248
    %v288 = vunpack.c.l.b16 %v249
    %v289 = vunpack.c.l.b16 %v250
    %v290 = vunpack.c.l.b16 %v251
    %v291 = vunpack.c.l.b16 %v252
    %v292 = vunpack.c.l.b16 %v253
    %v293 = vpack.c.b16 %v278, %v277
    %v294 = vpack.c.b16 %v280, %v279
    %v295 = vpack.c.b16 %v282, %v281
    %v296 = vpack.c.b16 %v284, %v283
    %v297 = vpack.c.b16 %v286, %v285
    %v298 = vpack.c.b16 %v288, %v287
    %v299 = vpack.c.b16 %v290, %v289
    %v300 = vpack.c.b16 %v292, %v291
    %309 = vmatprep.subr.bf16.mxu0 0
    %310 = vmatpush1.bf16.msra.mxu0 %v293
    %311 = vmatprep.subr.bf16.mxu0 0
    %312 = vmatpush1.bf16.msra.mxu0 %v294
    %313 = vmatprep.subr.bf16.mxu0 0
    %314 = vmatpush1.bf16.msra.mxu0 %v295
    %315 = vmatprep.subr.bf16.mxu0 0
    %316 = vmatpush1.bf16.msra.mxu0 %v296
    %317 = vmatprep.subr.bf16.mxu0 0
    %318 = vmatpush1.bf16.msra.mxu0 %v297
    %319 = vmatprep.subr.bf16.mxu0 0
    %320 = vmatpush1.bf16.msra.mxu0 %v298
    %321 = vmatprep.subr.bf16.mxu0 0
    %322 = vmatpush1.bf16.msra.mxu0 %v299
    %323 = vmatprep.subr.bf16.mxu0 0
    %324 = vmatpush1.bf16.msra.mxu0 %v300
    %325 = vmatprep.subr.bf16.mxu0 0
    %326 = vmatpush1.bf16.msra.mxu0 0
    %327 = vmatprep.subr.bf16.mxu0 0
    %328 = vmatpush1.bf16.msra.mxu0 0
    %329 = vmatprep.subr.bf16.mxu0 0
    %330 = vmatpush1.bf16.msra.mxu0 0
    %331 = vmatprep.subr.bf16.mxu0 0
    %332 = vmatpush1.bf16.msra.mxu0 0
    %333 = vmatprep.subr.bf16.mxu0 0
    %334 = vmatpush1.bf16.msra.mxu0 0
    %335 = vmatprep.subr.bf16.mxu0 0
    %336 = vmatpush1.bf16.msra.mxu0 0
    %337 = vmatprep.subr.bf16.mxu0 0
    %338 = vmatpush1.bf16.msra.mxu0 0
    %339 = vmatprep.subr.bf16.mxu0 0
    %340 = vmatpush1.bf16.msra.mxu0 0
    %341 = vmatprep.mubr.bf16.mxu0 0
    %342 = vmatmul.mubr.bf16.gmra.mrb[0].mxu0 %v237
    %v343 = vpop.f32.mrb[0].mxu0
    %v344 = vadd.f32 %v259, %v343
    %v345 = vpop.f32.mrb[0].mxu0
    %v346 = vpop.f32.mrb[0].mxu0
    %v347 = vadd.f32 %v259, %v346
    %v348 = vpop.f32.mrb[0].mxu0
    %349 = vdwg.mxu0
    %v350 = vtanh.pop %v344
    %v351 = vtanh.pop %v347
    %v352 = vmul.f32 %v350, 2.0
    %v353 = vmul.f32 %v351, 2.0
    %v354 = vpack.c.bf16 %v353, %v352
    %v356 = vunpack.c.l.b16 %v354
    %v357 = vunpack.c.h.b16 %v354
    %v358 = vpack.c.b16 %v356, %v356
    %v359 = vpack.c.b16 %v357, %v357
    %362 = vst [vmem:[#allocation7] sm:$0xf] %v358
    %363 = vst [vmem:[#allocation7 + $0x4] sm:$0xf] %v359
    // Predicated region
    $region38: #{tpu_custom_call.1} parent=1 // pred_check
      _
    $region39: #{tpu_custom_call.1} parent=1 // pred_check_branch
      %365 = sbr.rel (0) target = $region41
    $region40: #{tpu_custom_call.1} parent=1 // pred_region
      %s367 = ssub.s32 128, 128
      %368 = vsyncadd [#allocation4], %s367
      %s369 = sshll.u32 [#allocation7], 4
      %s370 = int_to_ptr.vmem [resolvable:$true] %s369
      %375 = dma.vmem_to_hbm [thread:$0]  %s370, 128, %s7, [#allocation4], 64, 64, 4
    $region41: #{tpu_custom_call.1} parent=1 // pred_fallthru
      _
    // Predicated region
    $region42: #{tpu_custom_call.1} parent=1 // pred_check
      _
    $region43: #{tpu_custom_call.1} parent=1 // pred_check_branch
      %377 = sbr.rel (0) target = $region45
    $region44: #{tpu_custom_call.1} parent=1 // pred_region
      %378 = dma.done [#allocation4], 128
    $region45: #{tpu_custom_call.1} parent=1 // pred_fallthru
      _
    %379 = vsyncpa [#allocation3], 1
    %380 = vsyncpa [#allocation6], 1
    %381 = vsyncpa [#allocation4], 1

</llo_original>
